<compile_context>
chip_gen: v7x
topology: tpu7x:2x2x1
jax: 0.10.0
libtpu: 0.0.40
codegen_flags: <defaults>
</compile_context>

<pallas_src>
import functools

import jax
import jax.numpy as jnp
from jax.experimental import pallas as pl
from jax.experimental.pallas import tpu as pltpu

EPS = 1e-6


def _round_up(a: int, b: int) -> int:
    return (a + b - 1) // b * b


def _gem_kernel(p_ref, x_ref, o_ref, *, inv_hw: float):
    # p_ref: SMEM (1,) f32       learned GeM exponent
    # x_ref: VMEM (TM, HW)       one tile of rows, native input dtype
    # o_ref: VMEM (TM, 1) f32    pooled value per row
    p = p_ref[0]
    x = x_ref[...].astype(jnp.float32)         # cast after DMA; reduce in f32
    xc = jnp.maximum(x, EPS)                   # clamp(min=eps) -> strictly > 0

    def _pool(xp):
        # mean over HW = lane-sum * (1/HW);  final power = exp(log(mean) / p)
        mean = jnp.sum(xp, axis=-1, keepdims=True) * inv_hw
        o_ref[...] = jnp.exp(jnp.log(mean) * (1.0 / p))

    @pl.when(p == 3.0)
    def _():                                   # default p: pure-VPU fast path
        _pool(xc * xc * xc)

    @pl.when(p != 3.0)
    def _():                                   # general learned p (EUP path)
        _pool(jnp.exp(p * jnp.log(xc)))


def gem_pallas(x, p, *, row_tile=None, interpret=False):
    """GeM pooling. x: (N, C, H, W), p: (1,) -> (N, C, 1, 1) in x.dtype."""
    n, c, h, w = x.shape
    r, hw = n * c, h * w
    x2d = x.reshape(r, hw)                     # keep native dtype (no upcast)
    p = p.reshape(1).astype(jnp.float32)

    if row_tile is None:
        # ~8 MiB per input buffer => <= ~16 MiB double-buffered: fits the
        # scoped-VMEM budget with headroom on v5e/v6e/v7x.
        budget = 8 * 1024 * 1024
        bytes_per_row = hw * x2d.dtype.itemsize
        row_tile = max(8, min(budget // max(bytes_per_row, 1), 4096,
                              _round_up(r, 8)))
        row_tile = (row_tile // 8) * 8         # sublane-aligned
    r_pad = _round_up(r, row_tile)
    if r_pad != r:
        # Padded rows compute harmless values (clamped to eps) and are sliced
        # off below; this keeps every block full-sized and the grid exact.
        x2d = jnp.pad(x2d, ((0, r_pad - r), (0, 0)))

    grid = (r_pad // row_tile,)
    kernel = functools.partial(_gem_kernel, inv_hw=1.0 / float(hw))

    out2d = pl.pallas_call(
        kernel,
        out_shape=jax.ShapeDtypeStruct((r_pad, 1), jnp.float32),
        grid=grid,
        in_specs=[
            pl.BlockSpec(memory_space=pltpu.SMEM),            # p (scalar)
            pl.BlockSpec((row_tile, hw), lambda i: (i, 0)),   # row tile
        ],
        out_specs=pl.BlockSpec((row_tile, 1), lambda i: (i, 0)),
        compiler_params=pltpu.CompilerParams(
            dimension_semantics=("parallel",),   # shard rows across v7x TCs
            vmem_limit_bytes=64 * 1024 * 1024,
        ),
        interpret=interpret,
    )(p, x2d)

    return out2d[:r].reshape(n, c, 1, 1).astype(x.dtype)


def gem_reference(x, p, eps=EPS):
    # Pure-JAX reference of the PyTorch forward for validation.
    xp = jnp.maximum(x, eps) ** p[0]
    pooled = jnp.mean(xp, axis=(-2, -1), keepdims=True)
    return pooled ** (1.0 / p[0])


if __name__ == "__main__":
    key = jax.random.PRNGKey(0)
    N, C, H, W = 2, 4, 16, 16
    x = jax.random.uniform(key, (N, C, H, W), dtype=jnp.float32,
                           minval=-1.0, maxval=2.0)

    # Parameter init matches nn.Parameter(torch.ones(1) * p) with p=3.
    p3 = jnp.ones((1,), dtype=jnp.float32) * 3.0
    y = gem_pallas(x, p3)
    jax.block_until_ready(y)
    assert y.shape == (N, C, 1, 1)
    y_ref = gem_reference(x, p3)
    assert jnp.allclose(y, y_ref, rtol=1e-4, atol=1e-6), (y, y_ref)

    # Non-default (learned) exponent exercises the general exp/log path.
    p_other = jnp.array([2.5], dtype=jnp.float32)
    y2 = gem_pallas(x, p_other)
    jax.block_until_ready(y2)
    y2_ref = gem_reference(x, p_other)
    assert jnp.allclose(y2, y2_ref, rtol=1e-4, atol=1e-6), (y2, y2_ref)

    print("KERNEL_OK")
</pallas_src>

<mosaic_0001>
module attributes {stable_mosaic.version = 11 : i64} {
  func.func @_gem_kernel(%arg0: i32, %arg1: memref<1xf32, #tpu.memory_space<smem>>, %arg2: memref<8x256xf32, #tpu.memory_space<vmem>>, %arg3: memref<8x1xf32, #tpu.memory_space<vmem>>) attributes {dimension_semantics = [#tpu.dimension_semantics<parallel>], iteration_bounds = array<i64: 1>, scalar_prefetch = 0 : i64, scratch_operands = 0 : i64, tpu.core_type = #tpu.core_type<tc>, window_params = [{transform_indices = @transform_0, window_bounds = array<i64: 1>}, {transform_indices = @transform_1, window_bounds = array<i64: 8, 256>}, {transform_indices = @transform_2, window_bounds = array<i64: 8, 1>}]} {
    %c0 = arith.constant 0 : index
    %0 = memref.load %arg1[%c0] : memref<1xf32, #tpu.memory_space<smem>>
    %c0_0 = arith.constant 0 : index
    %c0_1 = arith.constant 0 : index
    %1 = vector.load %arg2[%c0_0, %c0_1] : memref<8x256xf32, #tpu.memory_space<vmem>>, vector<8x256xf32>
    %cst = arith.constant 9.99999997E-7 : f32
    %2 = vector.broadcast %cst : f32 to vector<8x256xf32>
    %3 = arith.maximumf %1, %2 : vector<8x256xf32>
    %cst_2 = arith.constant 3.000000e+00 : f32
    %4 = arith.cmpf oeq, %0, %cst_2 : f32
    %5 = arith.extui %4 : i1 to i32
    %c0_i32 = arith.constant 0 : i32
    %6 = arith.cmpi ne, %5, %c0_i32 : i32
    scf.if %6 {
      %10 = arith.mulf %3, %3 : vector<8x256xf32>
      %11 = arith.mulf %10, %3 : vector<8x256xf32>
      %cst_5 = arith.constant dense<0.000000e+00> : vector<8xf32>
      %12 = vector.multi_reduction <add>, %11, %cst_5 [1] : vector<8x256xf32> to vector<8xf32>
      %13 = vector.shape_cast %12 : vector<8xf32> to vector<8x1xf32>
      %cst_6 = arith.constant 3.906250e-03 : f32
      %14 = vector.broadcast %cst_6 : f32 to vector<8x1xf32>
      %15 = arith.mulf %13, %14 : vector<8x1xf32>
      %16 = math.log %15 : vector<8x1xf32>
      %cst_7 = arith.constant 1.000000e+00 : f32
      %17 = arith.divf %cst_7, %0 : f32
      %18 = vector.broadcast %17 : f32 to vector<8x1xf32>
      %19 = arith.mulf %16, %18 : vector<8x1xf32>
      %20 = math.exp %19 : vector<8x1xf32>
      %c0_8 = arith.constant 0 : index
      %c0_9 = arith.constant 0 : index
      %21 = vector.load %arg3[%c0_8, %c0_9] : memref<8x1xf32, #tpu.memory_space<vmem>>, vector<8x1xf32>
      tpu.vector_store %arg3[%c0_8, %c0_9], %20 {strides = array<i32>} : memref<8x1xf32, #tpu.memory_space<vmem>>, vector<8x1xf32>,
    } else {
    }
    %cst_3 = arith.constant 3.000000e+00 : f32
    %7 = arith.cmpf one, %0, %cst_3 : f32
    %8 = arith.extui %7 : i1 to i32
    %c0_i32_4 = arith.constant 0 : i32
    %9 = arith.cmpi ne, %8, %c0_i32_4 : i32
    scf.if %9 {
      %10 = math.log %3 : vector<8x256xf32>
      %11 = vector.broadcast %0 : f32 to vector<8x256xf32>
      %12 = arith.mulf %11, %10 : vector<8x256xf32>
      %13 = math.exp %12 : vector<8x256xf32>
      %cst_5 = arith.constant dense<0.000000e+00> : vector<8xf32>
      %14 = vector.multi_reduction <add>, %13, %cst_5 [1] : vector<8x256xf32> to vector<8xf32>
      %15 = vector.shape_cast %14 : vector<8xf32> to vector<8x1xf32>
      %cst_6 = arith.constant 3.906250e-03 : f32
      %16 = vector.broadcast %cst_6 : f32 to vector<8x1xf32>
      %17 = arith.mulf %15, %16 : vector<8x1xf32>
      %18 = math.log %17 : vector<8x1xf32>
      %cst_7 = arith.constant 1.000000e+00 : f32
      %19 = arith.divf %cst_7, %0 : f32
      %20 = vector.broadcast %19 : f32 to vector<8x1xf32>
      %21 = arith.mulf %18, %20 : vector<8x1xf32>
      %22 = math.exp %21 : vector<8x1xf32>
      %c0_8 = arith.constant 0 : index
      %c0_9 = arith.constant 0 : index
      %23 = vector.load %arg3[%c0_8, %c0_9] : memref<8x1xf32, #tpu.memory_space<vmem>>, vector<8x1xf32>
      tpu.vector_store %arg3[%c0_8, %c0_9], %22 {strides = array<i32>} : memref<8x1xf32, #tpu.memory_space<vmem>>, vector<8x1xf32>,
    } else {
    }
    return
  }
  func.func @transform_0(%arg0: i32) -> i32 {
    %c0_i32 = arith.constant 0 : i32
    %c0_i32_0 = arith.constant 0 : i32
    return %c0_i32 : i32
  }
  func.func @transform_1(%arg0: i32) -> (i32, i32) {
    %c0_i32 = arith.constant 0 : i32
    %c0_i32_0 = arith.constant 0 : i32
    return %arg0, %c0_i32 : i32, i32
  }
  func.func @transform_2(%arg0: i32) -> (i32, i32) {
    %c0_i32 = arith.constant 0 : i32
    %c0_i32_0 = arith.constant 0 : i32
    return %arg0, %c0_i32 : i32, i32
  }
}

</mosaic_0001>

<llo_original>
// kernel: tpu_custom_call.1
$region0: #{tpu_custom_call.1}
  #allocation0 [shape = 'u32[]', space=smem, size = 0x4, offset = 0x4, fixed_abs, tag = 'smem constant byte address 0x4 - core index']
  #allocation1 [shape = 'u32[144,128]{1,0:T(1,128)}', space=vmem, size = 0x12000, scoped, tag = 'internal scratch']
  #allocation2 [shape = 'f32[1]{0:T(128)S(6)}', space=smem, size = 0x200, scoped, tag = 'scoped memory for tpu_custom_call.1']
  %s0 = inlined_call_operand.<no memory space> [shape: f32[1], index: 0, kind: input, shape index: {}]
  %s1 = inlined_call_operand.hbm [shape: f32[8,256], index: 1, kind: input, shape index: {}]
  %s2 = inlined_call_operand.hbm [shape: f32[8,1], index: 2, kind: output, shape index: {}]
  %s3 = sld [smem:[#allocation0]]
  $region30: #{tpu_custom_call.1} parent=0
    _
  %s5 = ssub.s32 1, %s3
  %s6 = scalar_select 0, %s5, %s3
  %7 = sst [smem:[#allocation2]] %s0
  $region1: #{tpu_custom_call.1} parent=0
    #allocation3 [shape = 'u8[8192]{0}', space=vmem, size = 0x2000, scoped, tag = 'input window, operand 1, single buffered']
    #allocation4 [shape = 's32[1]{0}', space=sflag, size = 0x4, scoped, tag = 'scoped memory for tpu_custom_call.1']
    #allocation5 [shape = 's32[1]{0}', space=sflag, size = 0x4, scoped, tag = 'scoped memory for tpu_custom_call.1']
    #allocation6 [shape = 'u8[4096]{0}', space=vmem, size = 0x1000, scoped, tag = 'output window, operand 0, single buffered']
    %8 = vsyncpa [#allocation4], 0
    %9 = vsyncpa [#allocation5], 0
    // Predicated region
    $region2: #{tpu_custom_call.1} parent=1 // pred_check
      _
    $region3: #{tpu_custom_call.1} parent=1 // pred_check_branch
      %11 = sbr.rel (0) target = $region5
    $region4: #{tpu_custom_call.1} parent=1 // pred_region
      _
    $region5: #{tpu_custom_call.1} parent=1 // pred_fallthru
      _
    // Predicated region
    $region6: #{tpu_custom_call.1} parent=1 // pred_check
      _
    $region7: #{tpu_custom_call.1} parent=1 // pred_check_branch
      %13 = sbr.rel (0) target = $region9
    $region8: #{tpu_custom_call.1} parent=1 // pred_region
      %s15 = ssub.s32 256, 256
      %16 = vsyncadd [#allocation4], %s15
      %s18 = sshll.u32 [#allocation3], 4
      %s19 = int_to_ptr.vmem [resolvable:$true] %s18
      %21 = dma.hbm_to_vmem [thread:$0]  %s1, 256, %s19, [#allocation4]
    $region9: #{tpu_custom_call.1} parent=1 // pred_fallthru
      _
    // Predicated region
    $region10: #{tpu_custom_call.1} parent=1 // pred_check
      _
    $region11: #{tpu_custom_call.1} parent=1 // pred_check_branch
      %23 = sbr.rel (0) target = $region13
    $region12: #{tpu_custom_call.1} parent=1 // pred_region
      %24 = dma.done [#allocation4], 256
    $region13: #{tpu_custom_call.1} parent=1 // pred_fallthru
      _
    %s25 = sld [smem:[#allocation2]]
    %v26 = vld [vmem:[#allocation3] sm:$0xff]
    %v27 = vld [vmem:[#allocation3 + $0x8] sm:$0xff]
    %v28 = vmax.f32 %v26, 1e-06
    %v29 = vmax.f32 %v27, 1e-06
    %p30 = scmp.eq.f32.partialorder %s25, 3.0
    // Predicated region
    $region14: #{tpu_custom_call.1} parent=1 // pred_check
      %p31 = pneg %p30
    $region15: #{tpu_custom_call.1} parent=1 // pred_check_branch
      %33 = sbr.rel (%p31) target = $region17
    $region16: #{tpu_custom_call.1} parent=1 // pred_region
      %v34 = vmul.f32 %v28, %v28
      %v35 = vmul.f32 %v29, %v29
      %v36 = vmul.f32 %v34, %v28
      %v37 = vmul.f32 %v35, %v29
      %v38 = vadd.f32 %v36, %v37
      %39 = vadd.xlane.f32.xlu0 %v38
      %v40 = vpop.xlane.xlu0 %39
      %v41 = vmul.f32 %v40, 0.00390625
      %v42 = vlog2.pop %v41
      %v43 = vmul.f32 %v42, 0.6931472
      %v44 = vstv %s25
      %v45 = vrcp.pop %v44
      %s46 = vtos %v45
      %v47 = vstv %s46
      %v48 = vmul.f32 %v43, %v47
      %v49 = vmul.f32 %v48, 1.442695
      %v50 = vpow.pop %v49
      %vm51 = vcmask 7168
      %52 = vst.msk [vmem:[#allocation6] sm:$0xff] %vm51, %v50
    $region17: #{tpu_custom_call.1} parent=1 // pred_fallthru
      _
    %p53 = scmp.ne.f32.partialorder %s25, 3.0
    // Predicated region
    $region18: #{tpu_custom_call.1} parent=1 // pred_check
      %p54 = pneg %p53
    $region19: #{tpu_custom_call.1} parent=1 // pred_check_branch
      %56 = sbr.rel (%p54) target = $region21
    $region20: #{tpu_custom_call.1} parent=1 // pred_region
      %v57 = vlog2.pop %v28
      %v58 = vmul.f32 %v57, 0.6931472
      %v59 = vlog2.pop %v29
      %v60 = vmul.f32 %v59, 0.6931472
      %v61 = vstv %s25
      %v62 = vmul.f32 %v61, %v58
      %v63 = vmul.f32 %v61, %v60
      %v64 = vmul.f32 %v62, 1.442695
      %v65 = vpow.pop %v64
      %v66 = vmul.f32 %v63, 1.442695
      %v67 = vpow.pop %v66
      %v68 = vadd.f32 %v65, %v67
      %69 = vadd.xlane.f32.xlu0 %v68
      %v70 = vpop.xlane.xlu0 %69
      %v71 = vmul.f32 %v70, 0.00390625
      %v72 = vlog2.pop %v71
      %v73 = vmul.f32 %v72, 0.6931472
      %v74 = vstv %s25
      %v75 = vrcp.pop %v74
      %s76 = vtos %v75
      %v77 = vstv %s76
      %v78 = vmul.f32 %v73, %v77
      %v79 = vmul.f32 %v78, 1.442695
      %v80 = vpow.pop %v79
      %vm81 = vcmask 7168
      %82 = vst.msk [vmem:[#allocation6] sm:$0xff] %vm81, %v80
    $region21: #{tpu_custom_call.1} parent=1 // pred_fallthru
      _
    // Predicated region
    $region22: #{tpu_custom_call.1} parent=1 // pred_check
      _
    $region23: #{tpu_custom_call.1} parent=1 // pred_check_branch
      %84 = sbr.rel (0) target = $region25
    $region24: #{tpu_custom_call.1} parent=1 // pred_region
      %s86 = ssub.s32 128, 128
      %87 = vsyncadd [#allocation5], %s86
      %s89 = sshll.u32 [#allocation6], 4
      %s90 = int_to_ptr.vmem [resolvable:$true] %s89
      %92 = dma.vmem_to_hbm [thread:$0]  %s90, 128, %s2, [#allocation5]
    $region25: #{tpu_custom_call.1} parent=1 // pred_fallthru
      _
    // Predicated region
    $region26: #{tpu_custom_call.1} parent=1 // pred_check
      _
    $region27: #{tpu_custom_call.1} parent=1 // pred_check_branch
      %94 = sbr.rel (0) target = $region29
    $region28: #{tpu_custom_call.1} parent=1 // pred_region
      %95 = dma.done [#allocation5], 128
    $region29: #{tpu_custom_call.1} parent=1 // pred_fallthru
      _
    %96 = vsyncpa [#allocation4], 1
    %97 = vsyncpa [#allocation5], 1

</llo_original>
